<compile_context>
chip_gen: v5e
topology: v5e:2x2
jax: 0.10.0
libtpu: 0.0.40
codegen_flags: <defaults>
</compile_context>

<pallas_src>
import functools

import jax
import jax.numpy as jnp
from jax import lax
from jax.experimental import pallas as pl
from jax.experimental.pallas import tpu as pltpu

# ---- module hyper-parameters (DilatedCNN pcnn_* config; stride fixed to 1) ----
IN_CHANNELS = 4
OUT_CHANNELS = 8
KERNEL_SIZE = 3
STRIDE = 1                                   # kernel assumes stride == 1
DILATION = 2
PADDING = (KERNEL_SIZE - 1) * DILATION       # = 4 (causal padding; output trimmed by PADDING)


def _dilated_conv1d_kernel(x_ref, w_ref, b_ref, o_ref, *, k, dilation, l_out):
    """One batch element of the fused causal dilated conv.

    x_ref: (C_in, L + pad)   causally padded input rows (VMEM)
    w_ref: (K, C_out, C_in)  per-tap weights (grid-invariant, VMEM)
    b_ref: (C_out, 1)        bias column, f32 (grid-invariant, VMEM)
    o_ref: (C_out, L_out)    output rows (VMEM)
    """
    # Tap 0, then accumulate the remaining taps: each tap is a STATIC lane-offset
    # slice of the padded input (no dynamic lane starts, no im2col materialization).
    acc = jnp.dot(w_ref[0], x_ref[:, 0:l_out], preferred_element_type=jnp.float32)
    for kk in range(1, k):
        tap = x_ref[:, kk * dilation: kk * dilation + l_out]
        acc = acc + jnp.dot(w_ref[kk], tap, preferred_element_type=jnp.float32)
    o_ref[...] = (acc + b_ref[...]).astype(o_ref.dtype)


def dilated_cnn_forward(x, weight, bias, *, input_dtype=None):
    """x: (N, C_in, L) f32; weight: (C_out, C_in, K); bias: (C_out,).

    Returns (N, C_out, L_out) — Conv1d(stride=1, padding=PADDING, dilation=DILATION)
    followed by dropping the trailing PADDING timesteps (L_out == L for this config).

    input_dtype: optionally jnp.bfloat16 to halve activation/weight HBM traffic
    (matmul still accumulates in f32). Default (None) keeps exact f32 semantics.
    """
    assert STRIDE == 1, "kernel assumes stride == 1"
    assert PADDING > 0, "module trims by `pad`; PADDING must be > 0"

    n, c_in, seq_len = x.shape
    c_out, _, k = weight.shape
    # trimmed output length: (L + 2*pad - dil*(K-1)) - pad
    l_out = seq_len + PADDING - DILATION * (k - 1)
    lp = seq_len + PADDING

    # ---- wrapper-side prep: no im2col slab, no major-axis transposes ----
    x_pad = jnp.pad(x, ((0, 0), (0, 0), (PADDING, 0)))         # (N, C_in, L+pad) causal pad
    w_taps = jnp.transpose(weight, (2, 0, 1))                   # (K, C_out, C_in) — tiny
    b_col = bias.reshape(c_out, 1).astype(jnp.float32)

    if input_dtype is not None:
        x_pad = x_pad.astype(input_dtype)
        w_taps = w_taps.astype(input_dtype)

    kernel = functools.partial(_dilated_conv1d_kernel, k=k, dilation=DILATION, l_out=l_out)

    # VMEM budget: per-batch in/out blocks, double-buffered by the pipeline.
    # Raise the scoped limit (16 MiB default on v5e) only when actually needed.
    in_itemsize = jnp.dtype(x_pad.dtype).itemsize
    out_itemsize = jnp.dtype(x.dtype).itemsize
    in_block_bytes = 8 * lp * in_itemsize          # C_in rounded up to 8 sublanes
    out_block_bytes = 8 * l_out * out_itemsize     # C_out == 8 sublanes
    vmem_needed = 2 * (in_block_bytes + out_block_bytes) + (1 << 16)
    compiler_kwargs = dict(dimension_semantics=("parallel",))
    if vmem_needed > (16 << 20):
        compiler_kwargs["vmem_limit_bytes"] = int(1.25 * vmem_needed)
    # TODO(synk): for extremely long sequences (per-batch blocks approaching VMEM),
    # add a halo'd time-tile grid axis instead of whole-sequence per-batch blocks.

    out = pl.pallas_call(
        kernel,
        out_shape=jax.ShapeDtypeStruct((n, c_out, l_out), x.dtype),
        grid_spec=pltpu.PrefetchScalarGridSpec(
            num_scalar_prefetch=0,
            grid=(n,),
            in_specs=[
                # per-batch padded input rows (batch dim squeezed out of the kernel view)
                pl.BlockSpec((None, c_in, lp), lambda b: (b, 0, 0)),
                # grid-invariant weights / bias (same block every step -> stay resident)
                pl.BlockSpec((k, c_out, c_in), lambda b: (0, 0, 0)),
                pl.BlockSpec((c_out, 1), lambda b: (0, 0)),
            ],
            out_specs=pl.BlockSpec((None, c_out, l_out), lambda b: (b, 0, 0)),
        ),
        compiler_params=pltpu.CompilerParams(**compiler_kwargs),
        cost_estimate=pl.CostEstimate(
            flops=2 * n * c_out * k * c_in * l_out,
            transcendentals=0,
            bytes_accessed=(in_itemsize * n * c_in * lp
                            + out_itemsize * n * c_out * l_out
                            + in_itemsize * k * c_out * c_in
                            + 4 * c_out),
        ),
    )(x_pad, w_taps, b_col)
    return out


def _reference_forward(x, weight, bias):
    """Pure-JAX reference: lax conv (NCL / OIK) + trailing-pad trim."""
    y = lax.conv_general_dilated(
        x, weight,
        window_strides=(STRIDE,),
        padding=[(PADDING, PADDING)],
        rhs_dilation=(DILATION,),
        dimension_numbers=("NCH", "OIH", "NCH"),
    )
    y = y + bias.reshape(1, -1, 1)
    return y[:, :, :-PADDING]


if __name__ == "__main__":
    key = jax.random.PRNGKey(0)
    kx, kw, kb = jax.random.split(key, 3)

    N, L = 2, 16
    x = jax.random.normal(kx, (N, IN_CHANNELS, L), dtype=jnp.float32)
    # Deterministic synthetic parameters (Conv1d weight: (C_out, C_in, K), bias: (C_out,))
    weight = 0.1 * jax.random.normal(kw, (OUT_CHANNELS, IN_CHANNELS, KERNEL_SIZE), dtype=jnp.float32)
    bias = 0.1 * jax.random.normal(kb, (OUT_CHANNELS,), dtype=jnp.float32)

    out = dilated_cnn_forward(x, weight, bias)
    out = jax.block_until_ready(out)

    ref = jax.block_until_ready(_reference_forward(x, weight, bias))
    assert out.shape == ref.shape == (N, OUT_CHANNELS, L), (out.shape, ref.shape)
    assert jnp.allclose(out, ref, atol=1e-5, rtol=1e-5), float(jnp.max(jnp.abs(out - ref)))

    print("KERNEL_OK")
</pallas_src>

<mosaic_0001>
module attributes {stable_mosaic.version = 11 : i64} {
  func.func @_dilated_conv1d_kernel(%arg0: i32, %arg1: memref<1x4x20xf32, #tpu.memory_space<vmem>>, %arg2: memref<3x8x4xf32, #tpu.memory_space<vmem>>, %arg3: memref<8x1xf32, #tpu.memory_space<vmem>>, %arg4: memref<1x8x16xf32, #tpu.memory_space<vmem>>) attributes {dimension_semantics = [#tpu.dimension_semantics<parallel>], iteration_bounds = array<i64: 2>, scalar_prefetch = 0 : i64, scratch_operands = 0 : i64, tpu.core_type = #tpu.core_type<tc>, window_params = [{transform_indices = @transform_0, window_bounds = array<i64: 1, 4, 20>}, {pipeline_mode = #tpu.pipeline_mode<synchronous>, transform_indices = @transform_1, window_bounds = array<i64: 3, 8, 4>}, {pipeline_mode = #tpu.pipeline_mode<synchronous>, transform_indices = @transform_2, window_bounds = array<i64: 8, 1>}, {transform_indices = @transform_3, window_bounds = array<i64: 1, 8, 16>}]} {
    %c0 = arith.constant 0 : index
    %c0_0 = arith.constant 0 : index
    %c0_1 = arith.constant 0 : index
    %0 = vector.load %arg2[%c0, %c0_0, %c0_1] : memref<3x8x4xf32, #tpu.memory_space<vmem>>, vector<1x8x4xf32>
    %1 = vector.shape_cast %0 : vector<1x8x4xf32> to vector<8x4xf32>
    %c0_2 = arith.constant 0 : index
    %c0_3 = arith.constant 0 : index
    %c0_4 = arith.constant 0 : index
    %2 = vector.load %arg1[%c0_2, %c0_3, %c0_4] : memref<1x4x20xf32, #tpu.memory_space<vmem>>, vector<1x4x16xf32>
    %3 = vector.shape_cast %2 : vector<1x4x16xf32> to vector<4x16xf32>
    %cst = arith.constant dense<0.000000e+00> : vector<8x16xf32>
    %4 = tpu.matmul %1, %3, %cst {dimension_numbers = #tpu.dot_dimension_numbers<[1], [0], [0], [1], [0, 0, 1, 1], [], []>} : vector<8x4xf32>, vector<4x16xf32>, vector<8x16xf32> -> vector<8x16xf32>
    %c0_5 = arith.constant 0 : index
    %c0_6 = arith.constant 0 : index
    %c2 = arith.constant 2 : index
    %5 = vector.load %arg1[%c0_5, %c0_6, %c2] : memref<1x4x20xf32, #tpu.memory_space<vmem>>, vector<1x4x16xf32>
    %6 = vector.shape_cast %5 : vector<1x4x16xf32> to vector<4x16xf32>
    %c1 = arith.constant 1 : index
    %c0_7 = arith.constant 0 : index
    %c0_8 = arith.constant 0 : index
    %7 = vector.load %arg2[%c1, %c0_7, %c0_8] : memref<3x8x4xf32, #tpu.memory_space<vmem>>, vector<1x8x4xf32>
    %8 = vector.shape_cast %7 : vector<1x8x4xf32> to vector<8x4xf32>
    %cst_9 = arith.constant dense<0.000000e+00> : vector<8x16xf32>
    %9 = tpu.matmul %8, %6, %cst_9 {dimension_numbers = #tpu.dot_dimension_numbers<[1], [0], [0], [1], [0, 0, 1, 1], [], []>} : vector<8x4xf32>, vector<4x16xf32>, vector<8x16xf32> -> vector<8x16xf32>
    %10 = arith.addf %4, %9 : vector<8x16xf32>
    %c0_10 = arith.constant 0 : index
    %c0_11 = arith.constant 0 : index
    %c4 = arith.constant 4 : index
    %11 = vector.load %arg1[%c0_10, %c0_11, %c4] : memref<1x4x20xf32, #tpu.memory_space<vmem>>, vector<1x4x16xf32>
    %12 = vector.shape_cast %11 : vector<1x4x16xf32> to vector<4x16xf32>
    %c2_12 = arith.constant 2 : index
    %c0_13 = arith.constant 0 : index
    %c0_14 = arith.constant 0 : index
    %13 = vector.load %arg2[%c2_12, %c0_13, %c0_14] : memref<3x8x4xf32, #tpu.memory_space<vmem>>, vector<1x8x4xf32>
    %14 = vector.shape_cast %13 : vector<1x8x4xf32> to vector<8x4xf32>
    %cst_15 = arith.constant dense<0.000000e+00> : vector<8x16xf32>
    %15 = tpu.matmul %14, %12, %cst_15 {dimension_numbers = #tpu.dot_dimension_numbers<[1], [0], [0], [1], [0, 0, 1, 1], [], []>} : vector<8x4xf32>, vector<4x16xf32>, vector<8x16xf32> -> vector<8x16xf32>
    %16 = arith.addf %10, %15 : vector<8x16xf32>
    %c0_16 = arith.constant 0 : index
    %c0_17 = arith.constant 0 : index
    %17 = vector.load %arg3[%c0_16, %c0_17] : memref<8x1xf32, #tpu.memory_space<vmem>>, vector<8x1xf32>
    %18 = vector.broadcast %17 : vector<8x1xf32> to vector<8x16xf32>
    %19 = arith.addf %16, %18 : vector<8x16xf32>
    %c0_18 = arith.constant 0 : index
    %c0_19 = arith.constant 0 : index
    %c0_20 = arith.constant 0 : index
    %20 = vector.load %arg4[%c0_18, %c0_19, %c0_20] : memref<1x8x16xf32, #tpu.memory_space<vmem>>, vector<1x8x16xf32>
    %21 = vector.shape_cast %20 : vector<1x8x16xf32> to vector<8x16xf32>
    %22 = vector.shape_cast %19 : vector<8x16xf32> to vector<1x8x16xf32>
    tpu.vector_store %arg4[%c0_18, %c0_19, %c0_20], %22 {strides = array<i32>} : memref<1x8x16xf32, #tpu.memory_space<vmem>>, vector<1x8x16xf32>,
    return
  }
  func.func @transform_0(%arg0: i32) -> (i32, i32, i32) {
    %c0_i32 = arith.constant 0 : i32
    %c0_i32_0 = arith.constant 0 : i32
    %c0_i32_1 = arith.constant 0 : i32
    return %arg0, %c0_i32, %c0_i32_0 : i32, i32, i32
  }
  func.func @transform_1(%arg0: i32) -> (i32, i32, i32) {
    %c0_i32 = arith.constant 0 : i32
    %c0_i32_0 = arith.constant 0 : i32
    %c0_i32_1 = arith.constant 0 : i32
    %c0_i32_2 = arith.constant 0 : i32
    return %c0_i32, %c0_i32_0, %c0_i32_1 : i32, i32, i32
  }
  func.func @transform_2(%arg0: i32) -> (i32, i32) {
    %c0_i32 = arith.constant 0 : i32
    %c0_i32_0 = arith.constant 0 : i32
    %c0_i32_1 = arith.constant 0 : i32
    return %c0_i32, %c0_i32_0 : i32, i32
  }
  func.func @transform_3(%arg0: i32) -> (i32, i32, i32) {
    %c0_i32 = arith.constant 0 : i32
    %c0_i32_0 = arith.constant 0 : i32
    %c0_i32_1 = arith.constant 0 : i32
    return %arg0, %c0_i32, %c0_i32_0 : i32, i32, i32
  }
}

</mosaic_0001>

<llo_original>
// kernel: tpu_custom_call.1
$region0: #{tpu_custom_call.1}
  #allocation0 [shape = 'u32[]', space=smem, size = 0x4, offset = 0x4, fixed_abs, tag = 'smem constant byte address 0x4 - core index']
  #allocation1 [shape = 'u32[72,128]{1,0:T(1,128)}', space=vmem, size = 0x9000, scoped, tag = 'internal scratch']
  %s0 = inlined_call_operand.vmem [shape: f32[2,4,20], index: 0, kind: input, shape index: {}]
  %s1 = inlined_call_operand.vmem [shape: f32[3,8,4], index: 1, kind: input, shape index: {}]
  %s2 = inlined_call_operand.vmem [shape: f32[8,1], index: 2, kind: input, shape index: {}]
  %s3 = inlined_call_operand.hbm [shape: f32[2,8,16], index: 3, kind: output, shape index: {}]
  %s4 = sld [smem:[#allocation0]]
  $region45: #{tpu_custom_call.1} parent=0
    _
  %s6 = ssub.s32 1, %s4
  %s7 = scalar_select 0, %s6, %s4
  $region1: #{tpu_custom_call.1} parent=0
    #allocation2 [shape = 'u8[8192]{0}', space=vmem, size = 0x2000, scoped, tag = 'output window, operand 0']
    #allocation3 [shape = 's32[2]{0}', space=sflag, size = 0x8, scoped, tag = 'scoped memory for tpu_custom_call.1']
    %8 = vsyncpa [#allocation3], 0
    %s9 = scalar_lea.sflag [#allocation3], 1
    %10 = vsyncpa %s9, 0
    loop: start=0, step=1, limit=4
    $region2: #{tpu_custom_call.1} parent=1 // loop_pre_header
      _
    $region3: #{tpu_custom_call.1} parent=1 // loop_header
      %s12 = sphi 0, %s16
      %p13 = scmp.ge.s32.totalorder %s12, 4
      %s22 = sphi 0, %s24
      %s25 = sphi 0, %s22
      %s26 = sphi 0, %s25
      %s42 = sphi 0, %s26
      %s46 = sphi 0, %s46
      %s48 = sphi 0, %s46
      %s49 = sphi 0, %s48
      %s63 = sphi 0, %s49
      %s67 = sphi 0, %s67
      %s69 = sphi 0, %s67
      %s70 = sphi 0, %s69
      %s84 = sphi 0, %s70
      %s90 = sphi 0, %s92
      %s93 = sphi 0, %s90
      %s94 = sphi 0, %s93
      %s110 = sphi 0, %s94
    $region4: #{tpu_custom_call.1} parent=1 // loop_header_branch
      %15 = sbr.rel (%p13) target = $region8
    $region5: #{tpu_custom_call.1} parent=1 // loop_body
      %s17 = ssub.s32 %s12, 1
      %s18 = ssub.s32 %s12, 2
      %s19 = sadd.s32 %s12, 1
      %s20 = ssub.s32 %s12, %s19
      %p21 = scmp.eq.s32.totalorder %s20, 0
      %s23 = sadd.s32 %s22, 1
      %s24 = scalar_select %p21, %s22, %s23
      %p27 = pneg %p21
      %p28 = scmp.eq.s32.totalorder %s12, 1
      %p29 = por %p27, %p28
      %p30 = scmp.ne.s32.totalorder %s22, %s25
      %p31 = scmp.eq.s32.totalorder %s12, 0
      %p32 = por %p30, %p31
      %p33 = scmp.ne.s32.totalorder %s22, %s25
      %p34 = scmp.eq.s32.totalorder %s17, 1
      %p35 = por %p33, %p34
      %p36 = scmp.ne.s32.totalorder %s25, %s26
      %p37 = scmp.eq.s32.totalorder %s17, 0
      %p38 = por %p36, %p37
      %p39 = scmp.ne.s32.totalorder %s25, %s26
      %p40 = scmp.eq.s32.totalorder %s18, 1
      %p41 = por %p39, %p40
      %p43 = scmp.ne.s32.totalorder %s26, %s42
      %p44 = scmp.eq.s32.totalorder %s18, 0
      %p45 = por %p43, %p44
      %s47 = sadd.s32 %s46, 1
      %p50 = scmp.eq.s32.totalorder %s12, 1
      %p51 = scmp.ne.s32.totalorder %s46, %s48
      %p52 = scmp.eq.s32.totalorder %s12, 0
      %p53 = por %p51, %p52
      %p54 = scmp.ne.s32.totalorder %s46, %s48
      %p55 = scmp.eq.s32.totalorder %s17, 1
      %p56 = por %p54, %p55
      %p57 = scmp.ne.s32.totalorder %s48, %s49
      %p58 = scmp.eq.s32.totalorder %s17, 0
      %p59 = por %p57, %p58
      %p60 = scmp.ne.s32.totalorder %s48, %s49
      %p61 = scmp.eq.s32.totalorder %s18, 1
      %p62 = por %p60, %p61
      %p64 = scmp.ne.s32.totalorder %s49, %s63
      %p65 = scmp.eq.s32.totalorder %s18, 0
      %p66 = por %p64, %p65
      %s68 = sadd.s32 %s67, 1
      %p71 = scmp.eq.s32.totalorder %s12, 1
      %p72 = scmp.ne.s32.totalorder %s67, %s69
      %p73 = scmp.eq.s32.totalorder %s12, 0
      %p74 = por %p72, %p73
      %p75 = scmp.ne.s32.totalorder %s67, %s69
      %p76 = scmp.eq.s32.totalorder %s17, 1
      %p77 = por %p75, %p76
      %p78 = scmp.ne.s32.totalorder %s69, %s70
      %p79 = scmp.eq.s32.totalorder %s17, 0
      %p80 = por %p78, %p79
      %p81 = scmp.ne.s32.totalorder %s69, %s70
      %p82 = scmp.eq.s32.totalorder %s18, 1
      %p83 = por %p81, %p82
      %p85 = scmp.ne.s32.totalorder %s70, %s84
      %p86 = scmp.eq.s32.totalorder %s18, 0
      %p87 = por %p85, %p86
      %s88 = ssub.s32 %s12, %s19
      %p89 = scmp.eq.s32.totalorder %s88, 0
      %s91 = sadd.s32 %s90, 1
      %s92 = scalar_select %p89, %s90, %s91
      %p95 = pneg %p89
      %p96 = scmp.eq.s32.totalorder %s12, 1
      %p97 = por %p95, %p96
      %p98 = scmp.ne.s32.totalorder %s90, %s93
      %p99 = scmp.eq.s32.totalorder %s12, 0
      %p100 = por %p98, %p99
      %p101 = scmp.ne.s32.totalorder %s90, %s93
      %p102 = scmp.eq.s32.totalorder %s17, 1
      %p103 = por %p101, %p102
      %p104 = scmp.ne.s32.totalorder %s93, %s94
      %p105 = scmp.eq.s32.totalorder %s17, 0
      %p106 = por %p104, %p105
      %p107 = scmp.ne.s32.totalorder %s93, %s94
      %p108 = scmp.eq.s32.totalorder %s18, 1
      %p109 = por %p107, %p108
      %p111 = scmp.ne.s32.totalorder %s94, %s110
      %p112 = scmp.eq.s32.totalorder %s18, 0
      %p113 = por %p111, %p112
      %p114 = scmp.le.s32.totalorder 1, %s12
      %p115 = scmp.lt.s32.totalorder %s12, 3
      %p116 = pnand %p114, %p115
      %p117 = pneg %p116
      // Predicated region
      $region9: #{tpu_custom_call.1} parent=5 // pred_check
        _
      $region10: #{tpu_custom_call.1} parent=5 // pred_check_branch
        %119 = sbr.rel (%p116) target = $region12
      $region11: #{tpu_custom_call.1} parent=5 // pred_region
        %s120 = ssub.s32 %s12, 1
        // Predicated region
        $region13: #{tpu_custom_call.1} parent=11 // pred_check
          %p121 = pneg %p59
        $region14: #{tpu_custom_call.1} parent=11 // pred_check_branch
          %123 = sbr.rel (%p121) target = $region16
        $region15: #{tpu_custom_call.1} parent=11 // pred_region
          _
        $region16: #{tpu_custom_call.1} parent=11 // pred_fallthru
          _
        // Predicated region
        $region17: #{tpu_custom_call.1} parent=11 // pred_check
          %p124 = pneg %p80
        $region18: #{tpu_custom_call.1} parent=11 // pred_check_branch
          %126 = sbr.rel (%p124) target = $region20
        $region19: #{tpu_custom_call.1} parent=11 // pred_region
          _
        $region20: #{tpu_custom_call.1} parent=11 // pred_fallthru
          _
      $region12: #{tpu_custom_call.1} parent=5 // pred_fallthru
        _
      %p127 = scmp.lt.s32.totalorder %s12, 2
      // Predicated region
      $region21: #{tpu_custom_call.1} parent=5 // pred_check
        %p128 = pneg %p127
      $region22: #{tpu_custom_call.1} parent=5 // pred_check_branch
        %130 = sbr.rel (%p128) target = $region24
      $region23: #{tpu_custom_call.1} parent=5 // pred_region
        // Predicated region
        $region25: #{tpu_custom_call.1} parent=23 // pred_check
          %p131 = pneg %p32
        $region26: #{tpu_custom_call.1} parent=23 // pred_check_branch
          %133 = sbr.rel (%p131) target = $region28
        $region27: #{tpu_custom_call.1} parent=23 // pred_region
          %p134 = scmp.lt.s32.totalorder %s12, 1
          %s135 = scalar_select %p134, %s12, 1
          %s136 = smul.addr %s135, 4
          %s137 = scalar_lea.vmem %s0, %s136
        $region28: #{tpu_custom_call.1} parent=23 // pred_fallthru
          _
      $region24: #{tpu_custom_call.1} parent=5 // pred_fallthru
        _
      %p138 = scmp.le.s32.totalorder 1, %s12
      %p139 = scmp.lt.s32.totalorder %s12, 3
      %p140 = pnand %p138, %p139
      %p141 = pneg %p140
      // Predicated region
      $region29: #{tpu_custom_call.1} parent=5 // pred_check
        _
      $region30: #{tpu_custom_call.1} parent=5 // pred_check_branch
        %143 = sbr.rel (%p140) target = $region32
      $region31: #{tpu_custom_call.1} parent=5 // pred_region
        %s144 = ssub.s32 %s12, 1
        %p145 = scmp.lt.s32.totalorder %s17, 1
        %s146 = scalar_select %p145, %s17, 1
        %s147 = smul.addr %s146, 4
        %s148 = scalar_lea.vmem %s0, %s147
        %p149 = pneg %p38
        %p150 = pneg %p35
        %p151 = pneg %p59
        %p152 = pneg %p56
        %p153 = pneg %p80
        %p154 = pneg %p77
        %p155 = pneg %p106
        %p156 = pneg %p103
        %s157 = sand.u32 %s93, 1
        %s158 = scalar_lea.sflag [#allocation3], %s157
        %s159 = sand.u32 %s93, 1
        %s160 = smul.addr %s159, 8
        %s161 = scalar_lea.vmem [#allocation2], %s160
        %p162 = scmp.lt.s32.totalorder %s17, 1
        %s163 = scalar_select %p162, %s17, 1
        %s164 = smul.addr %s163, 4
        %s165 = scalar_lea.vmem %s0, %s164
        %v166 = vld [vmem:[%s1] sm:$0xff]
        %v167 = vld [vmem:[%s165] sm:$0xf]
        %s168 = scalar_lea.vmem %s1, 8
        %v169 = vld [vmem:[%s168] sm:$0xff]
        %171 = vrot.lane.b32.xlu0 %v167, 126
        %v172 = vpop.permute.xlu0 %171
        %vm173 = vcmask 31744
        %v175 = vsel %vm173, %v169, 0
        %vm177 = vcmask 1043456
        %v178 = vsel %vm177, %v172, 0
        %180 = vmatpush.msra.mxu0 0.0
        %181 = vmatpush.msra.mxu0 0.0
        %182 = vmatpush.msra.mxu0 0.0
        %183 = vmatpush.msra.mxu0 0.0
        %184 = vmatpush.msra.mxu0 0.0
        %185 = vmatpush.msra.mxu0 0.0
        %186 = vmatpush.msra.mxu0 0.0
        %187 = vmatpush.msra.mxu0 0.0
        %188 = vmatpush.msra.mxu0 0.0
        %189 = vmatpush.msra.mxu0 0.0
        %190 = vmatpush.msra.mxu0 0.0
        %191 = vmatpush.msra.mxu0 0.0
        %192 = vmatpush.msra.mxu0 0.0
        %193 = vmatpush.msra.mxu0 0.0
        %194 = vmatpush.msra.mxu0 0.0
        %195 = vmatpush.msra.mxu0 %v178
        %196 = vmatmul.f32.gmra.mxu0 %v175
        %v197 = vpop.f32.mrf.mxu0
        %v198 = vadd.f32 0.0, %v197
        %199 = vdwg.mxu0
        %v201 = vsel %vm173, %v166, 0
        %v203 = vsel %vm177, %v167, 0
        %205 = vmatpush.msra.mxu0 0.0
        %206 = vmatpush.msra.mxu0 0.0
        %207 = vmatpush.msra.mxu0 0.0
        %208 = vmatpush.msra.mxu0 0.0
        %209 = vmatpush.msra.mxu0 0.0
        %210 = vmatpush.msra.mxu0 0.0
        %211 = vmatpush.msra.mxu0 0.0
        %212 = vmatpush.msra.mxu0 0.0
        %213 = vmatpush.msra.mxu0 0.0
        %214 = vmatpush.msra.mxu0 0.0
        %215 = vmatpush.msra.mxu0 0.0
        %216 = vmatpush.msra.mxu0 0.0
        %217 = vmatpush.msra.mxu0 0.0
        %218 = vmatpush.msra.mxu0 0.0
        %219 = vmatpush.msra.mxu0 0.0
        %220 = vmatpush.msra.mxu0 %v203
        %221 = vmatmul.f32.gmra.mxu0 %v201
        %v222 = vpop.f32.mrf.mxu0
        %v223 = vadd.f32 %v198, %v222
        %224 = vdwg.mxu0
        %s225 = scalar_lea.vmem %s1, 16
        %v226 = vld [vmem:[%s225] sm:$0xff]
        %227 = vrot.lane.b32.xlu0 %v167, 124
        %v228 = vpop.permute.xlu0 %227
        %v230 = vsel %vm173, %v226, 0
        %v232 = vsel %vm177, %v228, 0
        %234 = vmatpush.msra.mxu0 0.0
        %235 = vmatpush.msra.mxu0 0.0
        %236 = vmatpush.msra.mxu0 0.0
        %237 = vmatpush.msra.mxu0 0.0
        %238 = vmatpush.msra.mxu0 0.0
        %239 = vmatpush.msra.mxu0 0.0
        %240 = vmatpush.msra.mxu0 0.0
        %241 = vmatpush.msra.mxu0 0.0
        %242 = vmatpush.msra.mxu0 0.0
        %243 = vmatpush.msra.mxu0 0.0
        %244 = vmatpush.msra.mxu0 0.0
        %245 = vmatpush.msra.mxu0 0.0
        %246 = vmatpush.msra.mxu0 0.0
        %247 = vmatpush.msra.mxu0 0.0
        %248 = vmatpush.msra.mxu0 0.0
        %249 = vmatpush.msra.mxu0 %v232
        %250 = vmatmul.f32.gmra.mxu0 %v230
        %v251 = vpop.f32.mrf.mxu0
        %v252 = vadd.f32 0.0, %v251
        %253 = vdwg.mxu0
        %v254 = vadd.f32 %v223, %v252
        %v255 = vld [vmem:[%s2] sm:$0xff]
        %257 = vset.pattern.permute.xlu0 0
        %258 = vperm.xlu0 %257, %v255
        %v259 = vpop.permute.xlu0 %258
        %v261 = vadd.f32 %v254, %v259
        %vm262 = vcmask 130048
        %263 = vst.msk [vmem:[%s161] sm:$0xff] %vm262, %v261
        %s264 = sand.u32 %s93, 1
        %s265 = scalar_lea.sflag [#allocation3], %s264
        %s266 = sand.u32 %s93, 1
        %s267 = smul.addr %s266, 8
        %s268 = scalar_lea.vmem [#allocation2], %s267
        // Predicated region
        $region33: #{tpu_custom_call.1} parent=31 // pred_check
          %p269 = pneg %p103
        $region34: #{tpu_custom_call.1} parent=31 // pred_check_branch
          %271 = sbr.rel (%p269) target = $region36
        $region35: #{tpu_custom_call.1} parent=31 // pred_region
          %273 = vsyncadd %s265, 0
          %s274 = smul.addr %s17, 8
          %s275 = scalar_lea.hbm %s3, %s274
          %s277 = sshll.u32 %s268, 4
          %s278 = int_to_ptr.vmem [resolvable:$true] %s277
          %s279 = sshll.u32 %s275, 4
          %s280 = int_to_ptr.hbm [resolvable:$true] %s279
          %282 = dma.vmem_to_hbm [thread:$0]  %s278, 128, %s280, %s265
        $region36: #{tpu_custom_call.1} parent=31 // pred_fallthru
          _
      $region32: #{tpu_custom_call.1} parent=5 // pred_fallthru
        _
      %p283 = scmp.le.s32.totalorder 2, %s12
      // Predicated region
      $region37: #{tpu_custom_call.1} parent=5 // pred_check
        %p284 = pneg %p283
      $region38: #{tpu_custom_call.1} parent=5 // pred_check_branch
        %286 = sbr.rel (%p284) target = $region40
      $region39: #{tpu_custom_call.1} parent=5 // pred_region
        %s287 = ssub.s32 %s12, 2
        // Predicated region
        $region41: #{tpu_custom_call.1} parent=39 // pred_check
          %p288 = pneg %p109
        $region42: #{tpu_custom_call.1} parent=39 // pred_check_branch
          %290 = sbr.rel (%p288) target = $region44
        $region43: #{tpu_custom_call.1} parent=39 // pred_region
          %s291 = sand.u32 %s94, 1
          %s292 = scalar_lea.sflag [#allocation3], %s291
          %s293 = sand.u32 %s94, 1
          %s294 = smul.addr %s293, 8
          %s295 = scalar_lea.vmem [#allocation2], %s294
          %297 = dma.done %s292, 128
        $region44: #{tpu_custom_call.1} parent=39 // pred_fallthru
          _
      $region40: #{tpu_custom_call.1} parent=5 // pred_fallthru
        _
    $region6: #{tpu_custom_call.1} parent=1 // loop_footer
      %s16 = sadd.s32 1, %s12
    $region7: #{tpu_custom_call.1} parent=1 // loop_footer_branch
      %11 = sbr.rel target = $region3
    $region8: #{tpu_custom_call.1} parent=1 // loop_exit
      _
    %298 = vsyncpa [#allocation3], 1
    %s299 = scalar_lea.sflag [#allocation3], 1
    %300 = vsyncpa %s299, 1

</llo_original>
